<compile_context>
chip_gen: v7x
topology: tpu7x:2x2x1
jax: 0.10.0
libtpu: 0.0.40
codegen_flags: <defaults>
</compile_context>

<pallas_src>
import functools

import jax
import jax.numpy as jnp
from jax import lax
from jax.experimental import pallas as pl
from jax.experimental.pallas import tpu as pltpu

EPS = 1e-8


def _round_up(x: int, m: int) -> int:
    return ((x + m - 1) // m) * m


def _pick_divisor(n: int, candidates) -> int:
    for c in candidates:
        if c <= n and n % c == 0:
            return c
    return n


def _tpu_info():
    """(vmem_capacity_bytes, lowercase device_kind) with safe fallbacks."""
    kind = ""
    try:
        kind = jax.devices()[0].device_kind.lower()
    except Exception:
        pass
    vmem = None
    try:
        vmem = int(pltpu.get_tpu_info().vmem_capacity_bytes)
    except Exception:
        vmem = None
    if not vmem or vmem <= 0:
        # v5e / v6e: 128 MiB per TensorCore; v7x: 64 MiB (conservative default).
        vmem = (128 << 20) if ("v5" in kind or "v6" in kind) else (64 << 20)
    return vmem, kind


def _vmem_limit(est_bytes: int, cap_bytes: int) -> int:
    # Single-counted estimate + headroom, never above (capacity - 4 MiB).
    return int(max(min(cap_bytes - (4 << 20), est_bytes + (8 << 20)), 1 << 20))


# --------------------------------------------------------------------------
# Stage 1: row-wise L2 normalization  (F.normalize(p=2, dim=-1, eps)).
# --------------------------------------------------------------------------
def _l2norm_kernel(x_ref, xn_ref, *, eps):
    x = x_ref[...].astype(jnp.float32)                            # (TR, Dp)
    sumsq = jnp.sum(x * x, axis=-1, keepdims=True)                # (TR, 1)
    # x / max(||x||, eps) == x * rsqrt(max(sumsq, eps^2))  (one EUP op)
    inv = lax.rsqrt(jnp.maximum(sumsq, jnp.float32(eps * eps)))
    xn_ref[...] = (x * inv).astype(xn_ref.dtype)


# --------------------------------------------------------------------------
# Stage 2: key-tiled Gram row-max with running accumulator.
#   q_ref : (TQ, Dp) query rows          (block index follows i)
#   k_ref : (TK, Dp) key rows            (block index follows k)
#   out   : (1, 1, TQ) log(dist + eps) per query row, written at k == last
#   m_acc : (1, TQ) running max of dots  (VMEM scratch, carried over k)
# --------------------------------------------------------------------------
def _koleo_tile_kernel(q_ref, k_ref, out_ref, m_acc, *, tq, tk, n, npad, eps):
    i = pl.program_id(0)            # query-row tile
    k = pl.program_id(1)            # key-row tile (reduction axis)
    nk = pl.num_programs(1)
    q_start = i * tq
    k_start = k * tk

    @pl.when(k == 0)
    def _():
        # torch fills the Gram diagonal with -1 before the row max.
        m_acc[...] = jnp.full(m_acc.shape, -1.0, dtype=jnp.float32)

    # (TK, TQ) Gram tile: dots[a, b] = <key_{k_start+a}, query_{q_start+b}>.
    # Key index on sublanes, query index on lanes -> sublane reduce gives a
    # lane-dense (1, TQ) per-query max with no transposes anywhere.
    dots = lax.dot_general(
        k_ref[...], q_ref[...],
        dimension_numbers=(((1,), (1,)), ((), ())),
        preferred_element_type=jnp.float32)

    # Mask only on the tiles that need it (diagonal crossing / padded keys).
    diag_here = jnp.logical_and(q_start < k_start + tk, k_start < q_start + tq)
    needs_mask = diag_here
    if npad > n:
        needs_mask = jnp.logical_or(needs_mask, (k_start + tk) > n)

    @pl.when(jnp.logical_not(needs_mask))
    def _():
        m_acc[...] = jnp.maximum(m_acc[...],
                                 jnp.max(dots, axis=0, keepdims=True))

    @pl.when(needs_mask)
    def _():
        key_id = lax.broadcasted_iota(jnp.int32, (tk, tq), 0) + k_start
        qry_id = lax.broadcasted_iota(jnp.int32, (tk, tq), 1) + q_start
        bad = key_id == qry_id                       # self (diagonal) entries
        if npad > n:
            bad = jnp.logical_or(bad, key_id >= n)   # padded key rows
        d = jnp.where(bad, jnp.float32(-1.0), dots)
        m_acc[...] = jnp.maximum(m_acc[...],
                                 jnp.max(d, axis=0, keepdims=True))

    @pl.when(k == nk - 1)
    def _():
        m = m_acc[...]                                               # (1, TQ)
        dist = jnp.sqrt(jnp.maximum(2.0 - 2.0 * m, jnp.float32(0.0)))
        logt = jnp.log(dist + jnp.float32(eps))
        if npad > n:                                 # padded query rows -> 0
            qid = lax.broadcasted_iota(jnp.int32, (1, tq), 1) + q_start
            logt = jnp.where(qid < n, logt, jnp.float32(0.0))
        out_ref[...] = logt.reshape(1, 1, tq)


# --------------------------------------------------------------------------
# Small-N fast path: normalize + Gram + mask + log-sum in one kernel.
# --------------------------------------------------------------------------
def _koleo_fused_kernel(x_ref, out_ref, *, n, eps, mm_dtype):
    x = x_ref[...].astype(jnp.float32)                            # (Np, Dp)
    sumsq = jnp.sum(x * x, axis=-1, keepdims=True)
    xn = x * lax.rsqrt(jnp.maximum(sumsq, jnp.float32(eps * eps)))
    xm = xn.astype(mm_dtype)
    dots = lax.dot_general(xm, xm, (((1,), (1,)), ((), ())),
                           preferred_element_type=jnp.float32)    # (Np, Np)
    npd = x.shape[0]
    key_id = lax.broadcasted_iota(jnp.int32, (npd, npd), 0)       # "other" row
    qry_id = lax.broadcasted_iota(jnp.int32, (npd, npd), 1)       # query row
    bad = key_id == qry_id
    if npd > n:
        bad = jnp.logical_or(bad, key_id >= n)
    dots = jnp.where(bad, jnp.float32(-1.0), dots)
    m = jnp.max(dots, axis=0, keepdims=True)                      # (1, Np)
    dist = jnp.sqrt(jnp.maximum(2.0 - 2.0 * m, jnp.float32(0.0)))
    logt = jnp.log(dist + jnp.float32(eps))
    if npd > n:
        qid = lax.broadcasted_iota(jnp.int32, (1, npd), 1)
        logt = jnp.where(qid < n, logt, jnp.float32(0.0))
    out_ref[...] = jnp.sum(logt, axis=1, keepdims=True)           # (1, 1)


# --------------------------------------------------------------------------
# Wrapper: concat latents, flatten, pad, dispatch to fused / tiled kernels.
# --------------------------------------------------------------------------
def koleo_loss(emg_latent, emg_parallel_latent, *, eps=EPS,
               matmul_dtype=jnp.bfloat16, small_n_threshold=1024,
               tq_max=None, tk_max=2048):
    """KoLeoLoss forward: returns a scalar float32 loss.

    matmul_dtype: dtype of the Gram-matmul inputs only (accumulation and all
    elementwise / log math stay f32).  bf16 gives ~2x MXU throughput and
    halves the xn footprint; pass jnp.float32 for maximum fidelity when
    nearest-neighbor distances are very small (near embedding collapse).
    """
    joint = jnp.concatenate([emg_latent, emg_parallel_latent], axis=-1)
    x = joint.reshape(-1, joint.shape[-1]).astype(jnp.float32)     # (N, D)
    n, d = x.shape

    isz = jnp.dtype(matmul_dtype).itemsize
    sub = {1: 32, 2: 16}.get(isz, 8)          # sublane packing of matmul dtype
    dp = _round_up(d, 128)                    # lane-dense feature dim
    vmem_cap, kind = _tpu_info()

    # ---------------- small-N fast path: one fused pallas_call ----------------
    npad_s = _round_up(max(n, sub), sub)
    est_f = (2 * npad_s * dp * 4 + npad_s * dp * (4 + isz)
             + 5 * npad_s * npad_s + (1 << 20))
    if n <= small_n_threshold and est_f <= int(0.4 * vmem_cap):
        x_p = jnp.pad(x, ((0, npad_s - n), (0, dp - d)))
        out = pl.pallas_call(
            functools.partial(_koleo_fused_kernel, n=n, eps=eps,
                              mm_dtype=matmul_dtype),
            out_shape=jax.ShapeDtypeStruct((1, 1), jnp.float32),
            grid_spec=pltpu.PrefetchScalarGridSpec(
                num_scalar_prefetch=0, grid=(1,),
                in_specs=[pl.BlockSpec((npad_s, dp), lambda i: (0, 0))],
                out_specs=pl.BlockSpec((1, 1), lambda i: (0, 0))),
            compiler_params=pltpu.CompilerParams(
                dimension_semantics=("arbitrary",),
                vmem_limit_bytes=_vmem_limit(est_f, vmem_cap)),
            cost_estimate=pl.CostEstimate(
                flops=2 * npad_s * npad_s * dp + 3 * npad_s * dp,
                transcendentals=3 * npad_s,
                bytes_accessed=npad_s * dp * 4 + 4),
        )(x_p)
        return -(out[0, 0] / jnp.float32(n))

    # --------------------- large-N tiled two-stage path ---------------------
    # Query-row tile: one MXU M-tile (128 on v5e, 256 on v6e/v7x).
    tq = 128 if "v5" in kind else 256
    if tq_max is not None:
        tq = max(sub, min(tq, (int(tq_max) // sub) * sub))
    tq = min(tq, _round_up(n, sub))
    npad = _round_up(n, tq)
    nq = npad // tq

    # Key-row tile: largest multiple of tq that divides npad and keeps
    # q + double-buffered key tiles + dots/mask under ~55% of VMEM.
    budget = int(0.55 * vmem_cap)
    fixed = 2 * tq * dp * isz + 2 * tq * 4 + tq * 4 + (1 << 20)
    per_key_row = 2 * dp * isz + 8 * tq
    tk_fit = max(tq, (budget - fixed) // per_key_row)
    tk_cap = max(tq, min(int(tk_max), tk_fit))
    best = 1
    for f in range(1, nq + 1):
        if nq % f == 0 and f * tq <= tk_cap:
            best = f
    tk = best * tq
    nk = npad // tk

    x_p = jnp.pad(x, ((0, npad - n), (0, dp - d)))                 # (Npad, Dp)

    # ---- stage 1: row L2 normalization (HBM-bound; large row blocks) ----
    tr = _pick_divisor(npad, (1024, 512, 256, 128))
    est1 = 2 * tr * dp * (4 + isz) + (1 << 20)
    xn = pl.pallas_call(
        functools.partial(_l2norm_kernel, eps=eps),
        out_shape=jax.ShapeDtypeStruct((npad, dp), matmul_dtype),
        grid_spec=pltpu.PrefetchScalarGridSpec(
            num_scalar_prefetch=0, grid=(npad // tr,),
            in_specs=[pl.BlockSpec((tr, dp), lambda i: (i, 0))],
            out_specs=pl.BlockSpec((tr, dp), lambda i: (i, 0))),
        compiler_params=pltpu.CompilerParams(
            dimension_semantics=("parallel",),
            vmem_limit_bytes=_vmem_limit(est1, vmem_cap)),
        cost_estimate=pl.CostEstimate(
            flops=3 * npad * dp, transcendentals=npad,
            bytes_accessed=npad * dp * (4 + isz)),
    )(x_p)

    # ---- stage 2: key-tiled Gram row-max -> per-row log distances ----
    est2 = (2 * tq * dp * isz + 2 * tk * dp * isz + 2 * tq * 4 + tq * 4
            + 2 * tq * tk * 4 + (2 << 20))
    kern = functools.partial(_koleo_tile_kernel, tq=tq, tk=tk, n=n, npad=npad,
                             eps=eps)
    log_d = pl.pallas_call(
        kern,
        out_shape=jax.ShapeDtypeStruct((nq, 1, tq), jnp.float32),
        grid_spec=pltpu.PrefetchScalarGridSpec(
            num_scalar_prefetch=0, grid=(nq, nk),
            in_specs=[pl.BlockSpec((tq, dp), lambda i, k: (i, 0)),   # queries
                      pl.BlockSpec((tk, dp), lambda i, k: (k, 0))],  # keys
            out_specs=pl.BlockSpec((1, 1, tq), lambda i, k: (i, 0, 0)),
            scratch_shapes=[pltpu.VMEM((1, tq), jnp.float32)]),
        compiler_params=pltpu.CompilerParams(
            dimension_semantics=("parallel", "arbitrary"),
            vmem_limit_bytes=_vmem_limit(est2, vmem_cap)),
        cost_estimate=pl.CostEstimate(
            flops=2 * npad * npad * dp,
            transcendentals=2 * npad,
            bytes_accessed=(nq + 1) * npad * dp * isz + npad * 4),
    )(xn, xn)

    # loss = -mean(log(dist + eps)) over the real N rows (padded rows wrote 0).
    return -(jnp.sum(log_d) / jnp.float32(n))


if __name__ == "__main__":
    key = jax.random.PRNGKey(0)
    k1, k2, k3, k4 = jax.random.split(key, 4)

    # Case 1 (module-scale small shapes): (batch=2, seq=8, hidden=16) each
    # -> joint (2, 8, 32) -> N=16 rows, D=32.  Exercises the fused kernel.
    emg_latent = jax.random.normal(k1, (2, 8, 16), dtype=jnp.float32)
    emg_parallel_latent = jax.random.normal(k2, (2, 8, 16), dtype=jnp.float32)
    loss_small = jax.jit(koleo_loss)(emg_latent, emg_parallel_latent)

    # Case 2: N=1300, D=128 -> exercises the tiled two-stage path with
    # multiple key tiles (running-max accumulator, diag/pad masking).
    a2 = jax.random.normal(k3, (2, 650, 64), dtype=jnp.float32)
    b2 = jax.random.normal(k4, (2, 650, 64), dtype=jnp.float32)
    loss_big = jax.jit(functools.partial(koleo_loss, tk_max=512))(a2, b2)

    jax.block_until_ready((loss_small, loss_big))
    print("KERNEL_OK")
</pallas_src>

<mosaic_0001>
module attributes {stable_mosaic.version = 11 : i64} {
  func.func @_koleo_fused_kernel(%arg0: i32, %arg1: memref<16x128xf32, #tpu.memory_space<vmem>>, %arg2: memref<1x1xf32, #tpu.memory_space<vmem>>) attributes {dimension_semantics = [#tpu.dimension_semantics<arbitrary>], iteration_bounds = array<i64: 1>, scalar_prefetch = 0 : i64, scratch_operands = 0 : i64, tpu.core_type = #tpu.core_type<tc>, window_params = [{pipeline_mode = #tpu.pipeline_mode<synchronous>, transform_indices = @transform_0, window_bounds = array<i64: 16, 128>}, {pipeline_mode = #tpu.pipeline_mode<synchronous>, transform_indices = @transform_1, window_bounds = array<i64: 1, 1>}]} {
    %c0 = arith.constant 0 : index
    %c0_0 = arith.constant 0 : index
    %0 = vector.load %arg1[%c0, %c0_0] : memref<16x128xf32, #tpu.memory_space<vmem>>, vector<16x128xf32>
    %1 = arith.mulf %0, %0 : vector<16x128xf32>
    %cst = arith.constant dense<0.000000e+00> : vector<16xf32>
    %2 = vector.multi_reduction <add>, %1, %cst [1] : vector<16x128xf32> to vector<16xf32>
    %3 = vector.shape_cast %2 : vector<16xf32> to vector<16x1xf32>
    %cst_1 = arith.constant 1.000000e-16 : f32
    %4 = vector.broadcast %cst_1 : f32 to vector<16x1xf32>
    %5 = arith.maximumf %3, %4 : vector<16x1xf32>
    %6 = math.rsqrt %5 : vector<16x1xf32>
    %7 = vector.broadcast %6 : vector<16x1xf32> to vector<16x128xf32>
    %8 = arith.mulf %0, %7 : vector<16x128xf32>
    %9 = arith.truncf %8 : vector<16x128xf32> to vector<16x128xbf16>
    %cst_2 = arith.constant dense<0.000000e+00> : vector<16x16xf32>
    %10 = tpu.matmul %9, %9, %cst_2 {dimension_numbers = #tpu.dot_dimension_numbers<[1], [1], [0], [0], [0, 0, 1, 0], [], []>} : vector<16x128xbf16>, vector<16x128xbf16>, vector<16x16xf32> -> vector<16x16xf32>
    %11 = tpu.iota {dimensions = array<i32: 0>} : vector<16x16xi32>
    %12 = tpu.iota {dimensions = array<i32: 1>} : vector<16x16xi32>
    %13 = arith.cmpi eq, %11, %12 : vector<16x16xi32>
    %cst_3 = arith.constant -1.000000e+00 : f32
    %14 = vector.broadcast %cst_3 : f32 to vector<16x16xf32>
    %15 = arith.select %13, %14, %10 : vector<16x16xi1>, vector<16x16xf32>
    %cst_4 = arith.constant dense<0xFF800000> : vector<16xf32>
    %16 = vector.multi_reduction <maximumf>, %15, %cst_4 [0] : vector<16x16xf32> to vector<16xf32>
    %17 = vector.shape_cast %16 : vector<16xf32> to vector<1x16xf32>
    %cst_5 = arith.constant 2.000000e+00 : f32
    %18 = vector.broadcast %cst_5 : f32 to vector<1x16xf32>
    %19 = arith.mulf %18, %17 : vector<1x16xf32>
    %cst_6 = arith.constant 2.000000e+00 : f32
    %20 = vector.broadcast %cst_6 : f32 to vector<1x16xf32>
    %21 = arith.subf %20, %19 : vector<1x16xf32>
    %cst_7 = arith.constant 0.000000e+00 : f32
    %22 = vector.broadcast %cst_7 : f32 to vector<1x16xf32>
    %23 = arith.maximumf %21, %22 : vector<1x16xf32>
    %24 = math.sqrt %23 : vector<1x16xf32>
    %cst_8 = arith.constant 9.99999993E-9 : f32
    %25 = vector.broadcast %cst_8 : f32 to vector<1x16xf32>
    %26 = arith.addf %24, %25 : vector<1x16xf32>
    %27 = math.log %26 : vector<1x16xf32>
    %cst_9 = arith.constant dense<0.000000e+00> : vector<1xf32>
    %28 = vector.multi_reduction <add>, %27, %cst_9 [1] : vector<1x16xf32> to vector<1xf32>
    %29 = vector.shape_cast %28 : vector<1xf32> to vector<1x1xf32>
    %c0_10 = arith.constant 0 : index
    %c0_11 = arith.constant 0 : index
    %30 = vector.load %arg2[%c0_10, %c0_11] : memref<1x1xf32, #tpu.memory_space<vmem>>, vector<1x1xf32>
    tpu.vector_store %arg2[%c0_10, %c0_11], %29 {strides = array<i32>} : memref<1x1xf32, #tpu.memory_space<vmem>>, vector<1x1xf32>,
    return
  }
  func.func @transform_0(%arg0: i32) -> (i32, i32) {
    %c0_i32 = arith.constant 0 : i32
    %c0_i32_0 = arith.constant 0 : i32
    %c0_i32_1 = arith.constant 0 : i32
    return %c0_i32, %c0_i32_0 : i32, i32
  }
  func.func @transform_1(%arg0: i32) -> (i32, i32) {
    %c0_i32 = arith.constant 0 : i32
    %c0_i32_0 = arith.constant 0 : i32
    %c0_i32_1 = arith.constant 0 : i32
    return %c0_i32, %c0_i32_0 : i32, i32
  }
}

</mosaic_0001>

<llo_original>
// kernel: koleo_loss.1
$region0: #{koleo_loss.1}
  #allocation0 [shape = 'u32[]', space=smem, size = 0x4, offset = 0x4, fixed_abs, tag = 'smem constant byte address 0x4 - core index']
  #allocation1 [shape = 'u32[144,128]{1,0:T(1,128)}', space=vmem, size = 0x12000, scoped, tag = 'internal scratch']
  %s0 = inlined_call_operand.vmem [shape: f32[16,128], index: 0, kind: input, shape index: {}]
  %s1 = inlined_call_operand.hbm [shape: f32[1,1], index: 1, kind: output, shape index: {}]
  %s2 = sld [smem:[#allocation0]]
  $region14: #{koleo_loss.1} parent=0
    _
  %s4 = ssub.s32 1, %s2
  %s5 = scalar_select 0, %s4, %s2
  $region1: #{koleo_loss.1} parent=0
    #allocation2 [shape = 'u8[512]{0}', space=vmem, size = 0x400, scoped, tag = 'output window, operand 0, single buffered']
    #allocation3 [shape = 's32[1]{0}', space=sflag, size = 0x4, scoped, tag = 'scoped memory for koleo_loss.1']
    %6 = vsyncpa [#allocation3], 0
    // Predicated region
    $region2: #{koleo_loss.1} parent=1 // pred_check
      _
    $region3: #{koleo_loss.1} parent=1 // pred_check_branch
      %8 = sbr.rel (0) target = $region5
    $region4: #{koleo_loss.1} parent=1 // pred_region
      _
    $region5: #{koleo_loss.1} parent=1 // pred_fallthru
      _
    %v10 = vld [vmem:[%s0] sm:$0xff]
    %v11 = vld [vmem:[%s0 + $0x8] sm:$0xff]
    %v12 = vmul.f32 %v10, %v10
    %v13 = vmul.f32 %v11, %v11
    %14 = vadd.xlane.f32.xlu0 %v12
    %v15 = vpop.xlane.xlu0 %14
    %16 = vadd.xlane.f32.xlu0 %v13
    %v17 = vpop.xlane.xlu0 %16
    %v18 = vmax.f32 %v15, 1e-16
    %v19 = vmax.f32 %v17, 1e-16
    %v20 = vrsqrt.pop %v18
    %v21 = vrsqrt.pop %v19
    %v22 = vmul.f32 %v10, %v20
    %v23 = vmul.f32 %v11, %v21
    %v24 = vpack.c.bf16 %v23, %v22
    %25 = vmatprep.subr.bf16.mxu0 0
    %26 = vmatpush1.bf16.xpose.msra.mxu0 %v24
    %27 = vmatprep.subr.bf16.mxu0 0
    %28 = vmatpush1.bf16.xpose.msra.mxu0 0
    %29 = vmatprep.subr.bf16.mxu0 0
    %30 = vmatpush1.bf16.xpose.msra.mxu0 0
    %31 = vmatprep.subr.bf16.mxu0 0
    %32 = vmatpush1.bf16.xpose.msra.mxu0 0
    %33 = vmatprep.subr.bf16.mxu0 0
    %34 = vmatpush1.bf16.xpose.msra.mxu0 0
    %35 = vmatprep.subr.bf16.mxu0 0
    %36 = vmatpush1.bf16.xpose.msra.mxu0 0
    %37 = vmatprep.subr.bf16.mxu0 0
    %38 = vmatpush1.bf16.xpose.msra.mxu0 0
    %39 = vmatprep.subr.bf16.mxu0 0
    %40 = vmatpush1.bf16.xpose.msra.mxu0 0
    %41 = vmatprep.subr.bf16.mxu0 0
    %42 = vmatpush1.bf16.xpose.msra.mxu0 0
    %43 = vmatprep.subr.bf16.mxu0 0
    %44 = vmatpush1.bf16.xpose.msra.mxu0 0
    %45 = vmatprep.subr.bf16.mxu0 0
    %46 = vmatpush1.bf16.xpose.msra.mxu0 0
    %47 = vmatprep.subr.bf16.mxu0 0
    %48 = vmatpush1.bf16.xpose.msra.mxu0 0
    %49 = vmatprep.subr.bf16.mxu0 0
    %50 = vmatpush1.bf16.xpose.msra.mxu0 0
    %51 = vmatprep.subr.bf16.mxu0 0
    %52 = vmatpush1.bf16.xpose.msra.mxu0 0
    %53 = vmatprep.subr.bf16.mxu0 0
    %54 = vmatpush1.bf16.xpose.msra.mxu0 0
    %55 = vmatprep.subr.bf16.mxu0 0
    %56 = vmatpush1.bf16.xpose.msra.mxu0 0
    %57 = vmatprep.mubr.bf16.mxu0 0
    %58 = vmatmul.mubr.bf16.gmra.mrb[0].mxu0 %v24
    %v59 = vpop.f32.mrb[0].mxu0
    %v60 = vadd.f32 0.0, %v59
    %v61 = vpop.f32.mrb[0].mxu0
    %v62 = vpop.f32.mrb[0].mxu0
    %v63 = vadd.f32 0.0, %v62
    %v64 = vpop.f32.mrb[0].mxu0
    %65 = vdwg.mxu0
    %v66 = vlaneseq
    %v67 = vshrl.u32 %v66, 7
    %v68 = vadd.s32 %v67, 8
    %v69 = vlaneseq
    %v70 = vand.u32 %v69, 127
    %vm71 = vcmp.eq.s32.totalorder %v67, %v70
    %vm72 = vcmp.eq.s32.totalorder %v68, %v70
    %v73 = vsel %vm71, -1.0, %v60
    %v74 = vsel %vm72, -1.0, %v63
    %vm75 = vcmask 130048
    %v76 = vsel %vm75, %v73, -inf
    %v77 = vsel %vm75, %v74, -inf
    %v78 = vmax.f32 %v76, %v77
    %v79 = vrot.slane %v78, 4
    %v80 = vmax.f32 %v78, %v79
    %v81 = vrot.slane %v80, 2
    %v82 = vmax.f32 %v80, %v81
    %v83 = vrot.slane %v82, 1
    %v84 = vmax.f32 %v82, %v83
    %v85 = vmul.f32 %v84, 2.0
    %v86 = vsub.f32 2.0, %v85
    %v87 = vmax.f32 %v86, 0.0
    %v88 = vrsqrt.pop %v87
    %v89 = vmul.f32 %v87, %v88
    %vm90 = vcmp.eq.f32.partialorder %v87, inf
    %v91 = vsel %vm90, %v87, %v89
    %vm92 = vcmp.eq.f32.partialorder %v87, 0.0
    %v93 = vand.u32 %v87, 2147483648
    %v94 = vsel %vm92, %v93, %v91
    %v95 = vadd.f32 %v94, 1e-08
    %v96 = vlog2.pop %v95
    %v97 = vmul.f32 %v96, 0.6931472
    %v98 = vsel %vm75, %v97, 0.0
    %99 = vadd.xlane.f32.xlu0 %v98
    %v100 = vpop.xlane.xlu0 %99
    %vm101 = vcmask 0
    %102 = vst.msk [vmem:[#allocation2] sm:$0x1] %vm101, %v100
    // Predicated region
    $region6: #{koleo_loss.1} parent=1 // pred_check
      _
    $region7: #{koleo_loss.1} parent=1 // pred_check_branch
      %104 = sbr.rel (0) target = $region9
    $region8: #{koleo_loss.1} parent=1 // pred_region
      %s106 = ssub.s32 16, 16
      %107 = vsyncadd [#allocation3], %s106
      %s109 = sshll.u32 [#allocation2], 4
      %s110 = int_to_ptr.vmem [resolvable:$true] %s109
      %112 = dma.vmem_to_hbm [thread:$0]  %s110, 16, %s1, [#allocation3]
    $region9: #{koleo_loss.1} parent=1 // pred_fallthru
      _
    // Predicated region
    $region10: #{koleo_loss.1} parent=1 // pred_check
      _
    $region11: #{koleo_loss.1} parent=1 // pred_check_branch
      %114 = sbr.rel (0) target = $region13
    $region12: #{koleo_loss.1} parent=1 // pred_region
      %115 = dma.done [#allocation3], 16
    $region13: #{koleo_loss.1} parent=1 // pred_fallthru
      _
    %116 = vsyncpa [#allocation3], 1

</llo_original>
